<compile_context>
chip_gen: v7x
topology: tpu7x:2x2x1
jax: 0.10.0
libtpu: 0.0.40
codegen_flags: <defaults>
</compile_context>

<pallas_src>
import math

import jax
import jax.numpy as jnp
from jax.experimental import pallas as pl
from jax.experimental.pallas import tpu as pltpu


# ------------------------------ fused kernel --------------------------------

def vqa_fused_kernel(tok_ids_ref, patches_ref, emb_table_ref,
                     w_patch_ref, b_patch_ref, w_vproj_ref, b_vproj_ref,
                     w_tproj_ref, b_tproj_ref, w_cls_ref, b_cls_ref,
                     out_ref, pooled_t_ref):
    f32, bf16 = jnp.float32, jnp.bfloat16
    B_pad = out_ref.shape[0]
    P = patches_ref.shape[0] // B_pad          # patches per image (rows are p-major)
    B, S = tok_ids_ref.shape                   # logical batch / sequence length

    # ---- visual encoder: patch embed (bf16 MXU, f32 acc) -> tanh -> mean pool
    emb = jnp.tanh(
        jnp.dot(patches_ref[...], w_patch_ref[...], preferred_element_type=f32)
        + b_patch_ref[...])                                       # [P*B_pad, D_pad] f32
    # Mean pool over patches: p-major layout makes each of the P row-blocks a
    # tile-aligned [B_pad, D_pad] slice -> plain VPU adds (no O(B^2) pool matmul,
    # no extra pool-matrix DMA, no in-kernel reshape).
    pooled_v = jnp.zeros((B_pad, emb.shape[1]), f32)
    for p in range(P):                                            # static unroll
        pooled_v = pooled_v + emb[p * B_pad:(p + 1) * B_pad, :]
    pooled_v = pooled_v * (1.0 / P)
    img_out = jnp.tanh(
        jnp.dot(pooled_v.astype(bf16), w_vproj_ref[...], preferred_element_type=f32)
        + b_vproj_ref[...])                                       # [B_pad, D_pad] f32

    # ---- text encoder: in-kernel embedding gather (SMEM ids -> VMEM table) -> mean pool
    pooled_t_ref[...] = jnp.zeros_like(pooled_t_ref)
    for b in range(B):                                            # static unroll (tiny B, S)
        acc = jnp.zeros((1, pooled_t_ref.shape[1]), f32)
        for s in range(S):
            acc = acc + emb_table_ref[tok_ids_ref[b, s]]          # dynamic row load [1, De_pad]
        pooled_t_ref[pl.ds(b, 1), :] = acc * (1.0 / S)
    text_out = jnp.tanh(
        jnp.dot(pooled_t_ref[...].astype(bf16), w_tproj_ref[...],
                preferred_element_type=f32)
        + b_tproj_ref[...])                                       # [B_pad, D_pad] f32

    # ---- classifier: cat([text, img], 1) @ W_cls fused as ONE lane-concat matmul
    feats = jnp.concatenate([text_out, img_out], axis=1).astype(bf16)  # [B_pad, 2*D_pad]
    out_ref[...] = (jnp.dot(feats, w_cls_ref[...], preferred_element_type=f32)
                    + b_cls_ref[...])                             # [B_pad, K_pad] f32


# ------------------------------ glue helpers --------------------------------

def _round_up(x, m):
    return ((x + m - 1) // m) * m


def _pad2(x, rows, cols):
    r, c = x.shape
    return jnp.pad(x, ((0, rows - r), (0, cols - c)))


def extract_patches(img_nchw, ph, pw):
    # NCHW -> [B, num_patches, C*ph*pw]   (pure data movement, kept in JAX)
    B, C, H, W = img_nchw.shape
    x = img_nchw.reshape(B, C, H // ph, ph, W // pw, pw)
    x = x.transpose(0, 2, 4, 1, 3, 5)
    return x.reshape(B, (H // ph) * (W // pw), C * ph * pw)


def prepare_params(p, batch_size):
    """Pad + bf16-cast weights ONCE (hoisted out of the per-call path)."""
    bf16, f32 = jnp.bfloat16, jnp.float32
    Dp, D = p["w_patch"].shape
    De = p["emb_table"].shape[1]
    K = p["w_cls_text"].shape[1]
    g = dict(
        ph=p["ph"], pw=p["pw"],
        B=batch_size, B_pad=_round_up(batch_size, 8),
        Dp=Dp, Dp_pad=_round_up(Dp, 128),
        De=De, De_pad=_round_up(De, 128),
        D=D, D_pad=_round_up(D, 128),
        K=K, K_pad=_round_up(K, 128),
    )
    return dict(
        geom=g,
        w_patch=_pad2(p["w_patch"], g["Dp_pad"], g["D_pad"]).astype(bf16),
        b_patch=_pad2(p["b_patch"], 1, g["D_pad"]).astype(f32),
        w_vproj=_pad2(p["w_vproj"], g["D_pad"], g["D_pad"]).astype(bf16),
        b_vproj=_pad2(p["b_vproj"], 1, g["D_pad"]).astype(f32),
        w_tproj=_pad2(p["w_tproj"], g["De_pad"], g["D_pad"]).astype(bf16),
        b_tproj=_pad2(p["b_tproj"], 1, g["D_pad"]).astype(f32),
        # cat((text, img), 1) @ W  ==  [text | img] @ [[W_text], [W_img]]  (one MXU pass)
        w_cls=jnp.concatenate(
            [_pad2(p["w_cls_text"], g["D_pad"], g["K_pad"]),
             _pad2(p["w_cls_img"], g["D_pad"], g["K_pad"])], axis=0).astype(bf16),
        b_cls=_pad2(p["b_cls"], 1, g["K_pad"]).astype(f32),
        # Table stays f32 (it is gathered + summed, not a matmul operand); shaped
        # [VOCAB, 1, De_pad] so the in-kernel gather indexes the untiled leading axis.
        emb_table=_pad2(p["emb_table"], p["emb_table"].shape[0],
                        g["De_pad"]).astype(f32)[:, None, :],
    )


# ------------------------------- forward ------------------------------------

def vqa_forward(image, question, prepped):
    g = prepped["geom"]
    B, B_pad = g["B"], g["B_pad"]

    # XLA glue (pure data movement): patches -> p-major rows, one pad, bf16 cast.
    patches = extract_patches(image, g["ph"], g["pw"])             # [B, P, Dp]
    P = patches.shape[1]
    patches = jnp.transpose(patches, (1, 0, 2))                    # [P, B, Dp]
    patches = jnp.pad(patches, ((0, 0), (0, B_pad - B), (0, g["Dp_pad"] - g["Dp"])))
    patches = patches.reshape(P * B_pad, g["Dp_pad"]).astype(jnp.bfloat16)

    tok_ids = question.astype(jnp.int32)                           # [B, S] -> SMEM

    operands = (tok_ids, patches, prepped["emb_table"],
                prepped["w_patch"], prepped["b_patch"],
                prepped["w_vproj"], prepped["b_vproj"],
                prepped["w_tproj"], prepped["b_tproj"],
                prepped["w_cls"], prepped["b_cls"])

    # Advisory cost hint: lets XLA schedule this tiny call against surrounding glue.
    flops = 2 * (P * B_pad * g["Dp_pad"] * g["D_pad"]
                 + B_pad * g["D_pad"] * g["D_pad"]
                 + B_pad * g["De_pad"] * g["D_pad"]
                 + B_pad * 2 * g["D_pad"] * g["K_pad"])
    trans = P * B_pad * g["D_pad"] + 2 * B_pad * g["D_pad"]
    bytes_accessed = (sum(int(math.prod(a.shape)) * a.dtype.itemsize for a in operands)
                      + B_pad * g["K_pad"] * 4)

    smem = pl.BlockSpec(memory_space=pltpu.MemorySpace.SMEM)
    vmem = pl.BlockSpec(memory_space=pltpu.MemorySpace.VMEM)
    out_pad = pl.pallas_call(
        vqa_fused_kernel,
        out_shape=jax.ShapeDtypeStruct((B_pad, g["K_pad"]), jnp.float32),
        in_specs=[smem] + [vmem] * 10,
        out_specs=vmem,
        scratch_shapes=[pltpu.VMEM((B_pad, g["De_pad"]), jnp.float32)],
        cost_estimate=pl.CostEstimate(flops=flops, transcendentals=trans,
                                      bytes_accessed=bytes_accessed),
    )(*operands)

    return out_pad[:B, :g["K"]]


# --------------------------------- main --------------------------------------

if __name__ == "__main__":
    B, C, H, W = 2, 3, 16, 16       # image:   [B, C, H, W]  (NCHW)
    PH = PW = 4                     # patch size -> 16 patches of dim 48
    S = 8                           # question: [B, S] token ids
    VOCAB = 100
    DE = 32                         # text embedding dim
    D = 32                          # joint hidden dim (encoder output dim)
    K = 16                          # number of answer classes

    key = jax.random.PRNGKey(0)
    ks = jax.random.split(key, 12)

    image = jax.random.normal(ks[0], (B, C, H, W), jnp.float32)
    question = jax.random.randint(ks[1], (B, S), 0, VOCAB)

    Dp = C * PH * PW
    params = {
        "ph": PH, "pw": PW,
        # visual encoder (ViT-style patch embed + projection head)
        "w_patch": 0.02 * jax.random.normal(ks[2], (Dp, D), jnp.float32),
        "b_patch": 0.01 * jax.random.normal(ks[3], (1, D), jnp.float32),
        "w_vproj": 0.02 * jax.random.normal(ks[4], (D, D), jnp.float32),
        "b_vproj": 0.01 * jax.random.normal(ks[5], (1, D), jnp.float32),
        # text encoder (embedding table + pooler projection)
        "emb_table": 0.02 * jax.random.normal(ks[6], (VOCAB, DE), jnp.float32),
        "w_tproj": 0.02 * jax.random.normal(ks[7], (DE, D), jnp.float32),
        "b_tproj": 0.01 * jax.random.normal(ks[8], (1, D), jnp.float32),
        # classifier over cat([text_out, img_out], dim=1)  (W split text/img halves)
        "w_cls_text": 0.02 * jax.random.normal(ks[9], (D, K), jnp.float32),
        "w_cls_img": 0.02 * jax.random.normal(ks[10], (D, K), jnp.float32),
        "b_cls": 0.01 * jax.random.normal(ks[11], (1, K), jnp.float32),
    }

    prepped = prepare_params(params, batch_size=B)     # pad/cast weights once
    fwd = jax.jit(lambda img, q: vqa_forward(img, q, prepped))

    out = fwd(image, question)
    jax.block_until_ready(out)
    assert out.shape == (B, K) and out.dtype == jnp.float32

    # pure-JAX f32 reference (module semantics, no padding) for parity check
    def ref_forward(image, question, p):
        patches = extract_patches(image, p["ph"], p["pw"])
        emb = jnp.tanh(patches @ p["w_patch"] + p["b_patch"])
        img_out = jnp.tanh(emb.mean(axis=1) @ p["w_vproj"] + p["b_vproj"])
        tok = p["emb_table"][question]
        text_out = jnp.tanh(tok.mean(axis=1) @ p["w_tproj"] + p["b_tproj"])
        return text_out @ p["w_cls_text"] + img_out @ p["w_cls_img"] + p["b_cls"]

    ref = ref_forward(image, question, params)
    assert jnp.allclose(out, ref, atol=2e-3, rtol=2e-2), \
        float(jnp.max(jnp.abs(out - ref)))
    print("KERNEL_OK")
</pallas_src>

<mosaic_0001>
module attributes {stable_mosaic.version = 11 : i64} {
  func.func @vqa_fused_kernel(%arg0: memref<2x8xi32, #tpu.memory_space<smem>>, %arg1: memref<128x128xbf16, #tpu.memory_space<vmem>>, %arg2: memref<100x1x128xf32, #tpu.memory_space<vmem>>, %arg3: memref<128x128xbf16, #tpu.memory_space<vmem>>, %arg4: memref<1x128xf32, #tpu.memory_space<vmem>>, %arg5: memref<128x128xbf16, #tpu.memory_space<vmem>>, %arg6: memref<1x128xf32, #tpu.memory_space<vmem>>, %arg7: memref<128x128xbf16, #tpu.memory_space<vmem>>, %arg8: memref<1x128xf32, #tpu.memory_space<vmem>>, %arg9: memref<256x128xbf16, #tpu.memory_space<vmem>>, %arg10: memref<1x128xf32, #tpu.memory_space<vmem>>, %arg11: memref<8x128xf32, #tpu.memory_space<vmem>>, %arg12: memref<8x128xf32, #tpu.memory_space<vmem>>) attributes {dimension_semantics = [], scalar_prefetch = 0 : i64, scratch_operands = 1 : i64, tpu.core_type = #tpu.core_type<tc>} {
    %c0 = arith.constant 0 : index
    %c0_0 = arith.constant 0 : index
    %0 = vector.load %arg1[%c0, %c0_0] : memref<128x128xbf16, #tpu.memory_space<vmem>>, vector<128x128xbf16>
    %c0_1 = arith.constant 0 : index
    %c0_2 = arith.constant 0 : index
    %1 = vector.load %arg3[%c0_1, %c0_2] : memref<128x128xbf16, #tpu.memory_space<vmem>>, vector<128x128xbf16>
    %cst = arith.constant dense<0.000000e+00> : vector<128x128xf32>
    %2 = tpu.matmul %0, %1, %cst {dimension_numbers = #tpu.dot_dimension_numbers<[1], [0], [0], [1], [0, 0, 1, 1], [], []>} : vector<128x128xbf16>, vector<128x128xbf16>, vector<128x128xf32> -> vector<128x128xf32>
    %c0_3 = arith.constant 0 : index
    %c0_4 = arith.constant 0 : index
    %3 = vector.load %arg4[%c0_3, %c0_4] : memref<1x128xf32, #tpu.memory_space<vmem>>, vector<1x128xf32>
    %4 = vector.broadcast %3 : vector<1x128xf32> to vector<128x128xf32>
    %5 = arith.addf %2, %4 : vector<128x128xf32>
    %6 = math.tanh %5 : vector<128x128xf32>
    %cst_5 = arith.constant 0.000000e+00 : f32
    %7 = vector.broadcast %cst_5 : f32 to vector<8x128xf32>
    %8 = vector.extract_strided_slice %6 {offsets = [0, 0], sizes = [8, 128], strides = [1, 1]} : vector<128x128xf32> to vector<8x128xf32>
    %9 = arith.addf %7, %8 : vector<8x128xf32>
    %10 = vector.extract_strided_slice %6 {offsets = [8, 0], sizes = [8, 128], strides = [1, 1]} : vector<128x128xf32> to vector<8x128xf32>
    %11 = arith.addf %9, %10 : vector<8x128xf32>
    %12 = vector.extract_strided_slice %6 {offsets = [16, 0], sizes = [8, 128], strides = [1, 1]} : vector<128x128xf32> to vector<8x128xf32>
    %13 = arith.addf %11, %12 : vector<8x128xf32>
    %14 = vector.extract_strided_slice %6 {offsets = [24, 0], sizes = [8, 128], strides = [1, 1]} : vector<128x128xf32> to vector<8x128xf32>
    %15 = arith.addf %13, %14 : vector<8x128xf32>
    %16 = vector.extract_strided_slice %6 {offsets = [32, 0], sizes = [8, 128], strides = [1, 1]} : vector<128x128xf32> to vector<8x128xf32>
    %17 = arith.addf %15, %16 : vector<8x128xf32>
    %18 = vector.extract_strided_slice %6 {offsets = [40, 0], sizes = [8, 128], strides = [1, 1]} : vector<128x128xf32> to vector<8x128xf32>
    %19 = arith.addf %17, %18 : vector<8x128xf32>
    %20 = vector.extract_strided_slice %6 {offsets = [48, 0], sizes = [8, 128], strides = [1, 1]} : vector<128x128xf32> to vector<8x128xf32>
    %21 = arith.addf %19, %20 : vector<8x128xf32>
    %22 = vector.extract_strided_slice %6 {offsets = [56, 0], sizes = [8, 128], strides = [1, 1]} : vector<128x128xf32> to vector<8x128xf32>
    %23 = arith.addf %21, %22 : vector<8x128xf32>
    %24 = vector.extract_strided_slice %6 {offsets = [64, 0], sizes = [8, 128], strides = [1, 1]} : vector<128x128xf32> to vector<8x128xf32>
    %25 = arith.addf %23, %24 : vector<8x128xf32>
    %26 = vector.extract_strided_slice %6 {offsets = [72, 0], sizes = [8, 128], strides = [1, 1]} : vector<128x128xf32> to vector<8x128xf32>
    %27 = arith.addf %25, %26 : vector<8x128xf32>
    %28 = vector.extract_strided_slice %6 {offsets = [80, 0], sizes = [8, 128], strides = [1, 1]} : vector<128x128xf32> to vector<8x128xf32>
    %29 = arith.addf %27, %28 : vector<8x128xf32>
    %30 = vector.extract_strided_slice %6 {offsets = [88, 0], sizes = [8, 128], strides = [1, 1]} : vector<128x128xf32> to vector<8x128xf32>
    %31 = arith.addf %29, %30 : vector<8x128xf32>
    %32 = vector.extract_strided_slice %6 {offsets = [96, 0], sizes = [8, 128], strides = [1, 1]} : vector<128x128xf32> to vector<8x128xf32>
    %33 = arith.addf %31, %32 : vector<8x128xf32>
    %34 = vector.extract_strided_slice %6 {offsets = [104, 0], sizes = [8, 128], strides = [1, 1]} : vector<128x128xf32> to vector<8x128xf32>
    %35 = arith.addf %33, %34 : vector<8x128xf32>
    %36 = vector.extract_strided_slice %6 {offsets = [112, 0], sizes = [8, 128], strides = [1, 1]} : vector<128x128xf32> to vector<8x128xf32>
    %37 = arith.addf %35, %36 : vector<8x128xf32>
    %38 = vector.extract_strided_slice %6 {offsets = [120, 0], sizes = [8, 128], strides = [1, 1]} : vector<128x128xf32> to vector<8x128xf32>
    %39 = arith.addf %37, %38 : vector<8x128xf32>
    %cst_6 = arith.constant 6.250000e-02 : f32
    %40 = vector.broadcast %cst_6 : f32 to vector<8x128xf32>
    %41 = arith.mulf %39, %40 : vector<8x128xf32>
    %42 = arith.truncf %41 : vector<8x128xf32> to vector<8x128xbf16>
    %c0_7 = arith.constant 0 : index
    %c0_8 = arith.constant 0 : index
    %43 = vector.load %arg5[%c0_7, %c0_8] : memref<128x128xbf16, #tpu.memory_space<vmem>>, vector<128x128xbf16>
    %cst_9 = arith.constant dense<0.000000e+00> : vector<8x128xf32>
    %44 = tpu.matmul %42, %43, %cst_9 {dimension_numbers = #tpu.dot_dimension_numbers<[1], [0], [0], [1], [0, 0, 1, 1], [], []>} : vector<8x128xbf16>, vector<128x128xbf16>, vector<8x128xf32> -> vector<8x128xf32>
    %c0_10 = arith.constant 0 : index
    %c0_11 = arith.constant 0 : index
    %45 = vector.load %arg6[%c0_10, %c0_11] : memref<1x128xf32, #tpu.memory_space<vmem>>, vector<1x128xf32>
    %46 = vector.broadcast %45 : vector<1x128xf32> to vector<8x128xf32>
    %47 = arith.addf %44, %46 : vector<8x128xf32>
    %48 = math.tanh %47 : vector<8x128xf32>
    %cst_12 = arith.constant 0.000000e+00 : f32
    %49 = vector.broadcast %cst_12 : f32 to vector<8x128xf32>
    %c0_13 = arith.constant 0 : index
    %c0_14 = arith.constant 0 : index
    %50 = vector.load %arg12[%c0_13, %c0_14] : memref<8x128xf32, #tpu.memory_space<vmem>>, vector<8x128xf32>
    tpu.vector_store %arg12[%c0_13, %c0_14], %49 {strides = array<i32>} : memref<8x128xf32, #tpu.memory_space<vmem>>, vector<8x128xf32>,
    %cst_15 = arith.constant 0.000000e+00 : f32
    %51 = vector.broadcast %cst_15 : f32 to vector<1x128xf32>
    %c0_16 = arith.constant 0 : index
    %c0_17 = arith.constant 0 : index
    %52 = memref.load %arg0[%c0_16, %c0_17] : memref<2x8xi32, #tpu.memory_space<smem>>
    %53 = arith.index_cast %52 : i32 to index
    %c0_18 = arith.constant 0 : index
    %c0_19 = arith.constant 0 : index
    %54 = vector.load %arg2[%53, %c0_18, %c0_19] : memref<100x1x128xf32, #tpu.memory_space<vmem>>, vector<1x1x128xf32>
    %55 = vector.shape_cast %54 : vector<1x1x128xf32> to vector<1x128xf32>
    %56 = arith.addf %51, %55 : vector<1x128xf32>
    %c0_20 = arith.constant 0 : index
    %c1 = arith.constant 1 : index
    %57 = memref.load %arg0[%c0_20, %c1] : memref<2x8xi32, #tpu.memory_space<smem>>
    %58 = arith.index_cast %57 : i32 to index
    %c0_21 = arith.constant 0 : index
    %c0_22 = arith.constant 0 : index
    %59 = vector.load %arg2[%58, %c0_21, %c0_22] : memref<100x1x128xf32, #tpu.memory_space<vmem>>, vector<1x1x128xf32>
    %60 = vector.shape_cast %59 : vector<1x1x128xf32> to vector<1x128xf32>
    %61 = arith.addf %56, %60 : vector<1x128xf32>
    %c0_23 = arith.constant 0 : index
    %c2 = arith.constant 2 : index
    %62 = memref.load %arg0[%c0_23, %c2] : memref<2x8xi32, #tpu.memory_space<smem>>
    %63 = arith.index_cast %62 : i32 to index
    %c0_24 = arith.constant 0 : index
    %c0_25 = arith.constant 0 : index
    %64 = vector.load %arg2[%63, %c0_24, %c0_25] : memref<100x1x128xf32, #tpu.memory_space<vmem>>, vector<1x1x128xf32>
    %65 = vector.shape_cast %64 : vector<1x1x128xf32> to vector<1x128xf32>
    %66 = arith.addf %61, %65 : vector<1x128xf32>
    %c0_26 = arith.constant 0 : index
    %c3 = arith.constant 3 : index
    %67 = memref.load %arg0[%c0_26, %c3] : memref<2x8xi32, #tpu.memory_space<smem>>
    %68 = arith.index_cast %67 : i32 to index
    %c0_27 = arith.constant 0 : index
    %c0_28 = arith.constant 0 : index
    %69 = vector.load %arg2[%68, %c0_27, %c0_28] : memref<100x1x128xf32, #tpu.memory_space<vmem>>, vector<1x1x128xf32>
    %70 = vector.shape_cast %69 : vector<1x1x128xf32> to vector<1x128xf32>
    %71 = arith.addf %66, %70 : vector<1x128xf32>
    %c0_29 = arith.constant 0 : index
    %c4 = arith.constant 4 : index
    %72 = memref.load %arg0[%c0_29, %c4] : memref<2x8xi32, #tpu.memory_space<smem>>
    %73 = arith.index_cast %72 : i32 to index
    %c0_30 = arith.constant 0 : index
    %c0_31 = arith.constant 0 : index
    %74 = vector.load %arg2[%73, %c0_30, %c0_31] : memref<100x1x128xf32, #tpu.memory_space<vmem>>, vector<1x1x128xf32>
    %75 = vector.shape_cast %74 : vector<1x1x128xf32> to vector<1x128xf32>
    %76 = arith.addf %71, %75 : vector<1x128xf32>
    %c0_32 = arith.constant 0 : index
    %c5 = arith.constant 5 : index
    %77 = memref.load %arg0[%c0_32, %c5] : memref<2x8xi32, #tpu.memory_space<smem>>
    %78 = arith.index_cast %77 : i32 to index
    %c0_33 = arith.constant 0 : index
    %c0_34 = arith.constant 0 : index
    %79 = vector.load %arg2[%78, %c0_33, %c0_34] : memref<100x1x128xf32, #tpu.memory_space<vmem>>, vector<1x1x128xf32>
    %80 = vector.shape_cast %79 : vector<1x1x128xf32> to vector<1x128xf32>
    %81 = arith.addf %76, %80 : vector<1x128xf32>
    %c0_35 = arith.constant 0 : index
    %c6 = arith.constant 6 : index
    %82 = memref.load %arg0[%c0_35, %c6] : memref<2x8xi32, #tpu.memory_space<smem>>
    %83 = arith.index_cast %82 : i32 to index
    %c0_36 = arith.constant 0 : index
    %c0_37 = arith.constant 0 : index
    %84 = vector.load %arg2[%83, %c0_36, %c0_37] : memref<100x1x128xf32, #tpu.memory_space<vmem>>, vector<1x1x128xf32>
    %85 = vector.shape_cast %84 : vector<1x1x128xf32> to vector<1x128xf32>
    %86 = arith.addf %81, %85 : vector<1x128xf32>
    %c0_38 = arith.constant 0 : index
    %c7 = arith.constant 7 : index
    %87 = memref.load %arg0[%c0_38, %c7] : memref<2x8xi32, #tpu.memory_space<smem>>
    %88 = arith.index_cast %87 : i32 to index
    %c0_39 = arith.constant 0 : index
    %c0_40 = arith.constant 0 : index
    %89 = vector.load %arg2[%88, %c0_39, %c0_40] : memref<100x1x128xf32, #tpu.memory_space<vmem>>, vector<1x1x128xf32>
    %90 = vector.shape_cast %89 : vector<1x1x128xf32> to vector<1x128xf32>
    %91 = arith.addf %86, %90 : vector<1x128xf32>
    %cst_41 = arith.constant 1.250000e-01 : f32
    %92 = vector.broadcast %cst_41 : f32 to vector<1x128xf32>
    %93 = arith.mulf %91, %92 : vector<1x128xf32>
    %c0_42 = arith.constant 0 : index
    %c0_43 = arith.constant 0 : index
    %94 = vector.load %arg12[%c0_42, %c0_43] : memref<8x128xf32, #tpu.memory_space<vmem>>, vector<1x128xf32>
    tpu.vector_store %arg12[%c0_42, %c0_43], %93 {strides = array<i32>} : memref<8x128xf32, #tpu.memory_space<vmem>>, vector<1x128xf32>,
    %cst_44 = arith.constant 0.000000e+00 : f32
    %95 = vector.broadcast %cst_44 : f32 to vector<1x128xf32>
    %c1_45 = arith.constant 1 : index
    %c0_46 = arith.constant 0 : index
    %96 = memref.load %arg0[%c1_45, %c0_46] : memref<2x8xi32, #tpu.memory_space<smem>>
    %97 = arith.index_cast %96 : i32 to index
    %c0_47 = arith.constant 0 : index
    %c0_48 = arith.constant 0 : index
    %98 = vector.load %arg2[%97, %c0_47, %c0_48] : memref<100x1x128xf32, #tpu.memory_space<vmem>>, vector<1x1x128xf32>
    %99 = vector.shape_cast %98 : vector<1x1x128xf32> to vector<1x128xf32>
    %100 = arith.addf %95, %99 : vector<1x128xf32>
    %c1_49 = arith.constant 1 : index
    %c1_50 = arith.constant 1 : index
    %101 = memref.load %arg0[%c1_49, %c1_50] : memref<2x8xi32, #tpu.memory_space<smem>>
    %102 = arith.index_cast %101 : i32 to index
    %c0_51 = arith.constant 0 : index
    %c0_52 = arith.constant 0 : index
    %103 = vector.load %arg2[%102, %c0_51, %c0_52] : memref<100x1x128xf32, #tpu.memory_space<vmem>>, vector<1x1x128xf32>
    %104 = vector.shape_cast %103 : vector<1x1x128xf32> to vector<1x128xf32>
    %105 = arith.addf %100, %104 : vector<1x128xf32>
    %c1_53 = arith.constant 1 : index
    %c2_54 = arith.constant 2 : index
    %106 = memref.load %arg0[%c1_53, %c2_54] : memref<2x8xi32, #tpu.memory_space<smem>>
    %107 = arith.index_cast %106 : i32 to index
    %c0_55 = arith.constant 0 : index
    %c0_56 = arith.constant 0 : index
    %108 = vector.load %arg2[%107, %c0_55, %c0_56] : memref<100x1x128xf32, #tpu.memory_space<vmem>>, vector<1x1x128xf32>
    %109 = vector.shape_cast %108 : vector<1x1x128xf32> to vector<1x128xf32>
    %110 = arith.addf %105, %109 : vector<1x128xf32>
    %c1_57 = arith.constant 1 : index
    %c3_58 = arith.constant 3 : index
    %111 = memref.load %arg0[%c1_57, %c3_58] : memref<2x8xi32, #tpu.memory_space<smem>>
    %112 = arith.index_cast %111 : i32 to index
    %c0_59 = arith.constant 0 : index
    %c0_60 = arith.constant 0 : index
    %113 = vector.load %arg2[%112, %c0_59, %c0_60] : memref<100x1x128xf32, #tpu.memory_space<vmem>>, vector<1x1x128xf32>
    %114 = vector.shape_cast %113 : vector<1x1x128xf32> to vector<1x128xf32>
    %115 = arith.addf %110, %114 : vector<1x128xf32>
    %c1_61 = arith.constant 1 : index
    %c4_62 = arith.constant 4 : index
    %116 = memref.load %arg0[%c1_61, %c4_62] : memref<2x8xi32, #tpu.memory_space<smem>>
    %117 = arith.index_cast %116 : i32 to index
    %c0_63 = arith.constant 0 : index
    %c0_64 = arith.constant 0 : index
    %118 = vector.load %arg2[%117, %c0_63, %c0_64] : memref<100x1x128xf32, #tpu.memory_space<vmem>>, vector<1x1x128xf32>
    %119 = vector.shape_cast %118 : vector<1x1x128xf32> to vector<1x128xf32>
    %120 = arith.addf %115, %119 : vector<1x128xf32>
    %c1_65 = arith.constant 1 : index
    %c5_66 = arith.constant 5 : index
    %121 = memref.load %arg0[%c1_65, %c5_66] : memref<2x8xi32, #tpu.memory_space<smem>>
    %122 = arith.index_cast %121 : i32 to index
    %c0_67 = arith.constant 0 : index
    %c0_68 = arith.constant 0 : index
    %123 = vector.load %arg2[%122, %c0_67, %c0_68] : memref<100x1x128xf32, #tpu.memory_space<vmem>>, vector<1x1x128xf32>
    %124 = vector.shape_cast %123 : vector<1x1x128xf32> to vector<1x128xf32>
    %125 = arith.addf %120, %124 : vector<1x128xf32>
    %c1_69 = arith.constant 1 : index
    %c6_70 = arith.constant 6 : index
    %126 = memref.load %arg0[%c1_69, %c6_70] : memref<2x8xi32, #tpu.memory_space<smem>>
    %127 = arith.index_cast %126 : i32 to index
    %c0_71 = arith.constant 0 : index
    %c0_72 = arith.constant 0 : index
    %128 = vector.load %arg2[%127, %c0_71, %c0_72] : memref<100x1x128xf32, #tpu.memory_space<vmem>>, vector<1x1x128xf32>
    %129 = vector.shape_cast %128 : vector<1x1x128xf32> to vector<1x128xf32>
    %130 = arith.addf %125, %129 : vector<1x128xf32>
    %c1_73 = arith.constant 1 : index
    %c7_74 = arith.constant 7 : index
    %131 = memref.load %arg0[%c1_73, %c7_74] : memref<2x8xi32, #tpu.memory_space<smem>>
    %132 = arith.index_cast %131 : i32 to index
    %c0_75 = arith.constant 0 : index
    %c0_76 = arith.constant 0 : index
    %133 = vector.load %arg2[%132, %c0_75, %c0_76] : memref<100x1x128xf32, #tpu.memory_space<vmem>>, vector<1x1x128xf32>
    %134 = vector.shape_cast %133 : vector<1x1x128xf32> to vector<1x128xf32>
    %135 = arith.addf %130, %134 : vector<1x128xf32>
    %cst_77 = arith.constant 1.250000e-01 : f32
    %136 = vector.broadcast %cst_77 : f32 to vector<1x128xf32>
    %137 = arith.mulf %135, %136 : vector<1x128xf32>
    %c1_78 = arith.constant 1 : index
    %c0_79 = arith.constant 0 : index
    %138 = vector.load %arg12[%c1_78, %c0_79] : memref<8x128xf32, #tpu.memory_space<vmem>>, vector<1x128xf32>
    tpu.vector_store %arg12[%c1_78, %c0_79], %137 {strides = array<i32>} : memref<8x128xf32, #tpu.memory_space<vmem>>, vector<1x128xf32>,
    %c0_80 = arith.constant 0 : index
    %c0_81 = arith.constant 0 : index
    %139 = vector.load %arg12[%c0_80, %c0_81] : memref<8x128xf32, #tpu.memory_space<vmem>>, vector<8x128xf32>
    %140 = arith.truncf %139 : vector<8x128xf32> to vector<8x128xbf16>
    %c0_82 = arith.constant 0 : index
    %c0_83 = arith.constant 0 : index
    %141 = vector.load %arg7[%c0_82, %c0_83] : memref<128x128xbf16, #tpu.memory_space<vmem>>, vector<128x128xbf16>
    %cst_84 = arith.constant dense<0.000000e+00> : vector<8x128xf32>
    %142 = tpu.matmul %140, %141, %cst_84 {dimension_numbers = #tpu.dot_dimension_numbers<[1], [0], [0], [1], [0, 0, 1, 1], [], []>} : vector<8x128xbf16>, vector<128x128xbf16>, vector<8x128xf32> -> vector<8x128xf32>
    %c0_85 = arith.constant 0 : index
    %c0_86 = arith.constant 0 : index
    %143 = vector.load %arg8[%c0_85, %c0_86] : memref<1x128xf32, #tpu.memory_space<vmem>>, vector<1x128xf32>
    %144 = vector.broadcast %143 : vector<1x128xf32> to vector<8x128xf32>
    %145 = arith.addf %142, %144 : vector<8x128xf32>
    %146 = math.tanh %145 : vector<8x128xf32>
    %147 = tpu.concatenate %146, %48 in 1 : vector<8x128xf32>, vector<8x128xf32> -> vector<8x256xf32>
    %148 = arith.truncf %147 : vector<8x256xf32> to vector<8x256xbf16>
    %c0_87 = arith.constant 0 : index
    %c0_88 = arith.constant 0 : index
    %149 = vector.load %arg9[%c0_87, %c0_88] : memref<256x128xbf16, #tpu.memory_space<vmem>>, vector<256x128xbf16>
    %cst_89 = arith.constant dense<0.000000e+00> : vector<8x128xf32>
    %150 = tpu.matmul %148, %149, %cst_89 {dimension_numbers = #tpu.dot_dimension_numbers<[1], [0], [0], [1], [0, 0, 1, 1], [], []>} : vector<8x256xbf16>, vector<256x128xbf16>, vector<8x128xf32> -> vector<8x128xf32>
    %c0_90 = arith.constant 0 : index
    %c0_91 = arith.constant 0 : index
    %151 = vector.load %arg10[%c0_90, %c0_91] : memref<1x128xf32, #tpu.memory_space<vmem>>, vector<1x128xf32>
    %152 = vector.broadcast %151 : vector<1x128xf32> to vector<8x128xf32>
    %153 = arith.addf %150, %152 : vector<8x128xf32>
    %c0_92 = arith.constant 0 : index
    %c0_93 = arith.constant 0 : index
    %154 = vector.load %arg11[%c0_92, %c0_93] : memref<8x128xf32, #tpu.memory_space<vmem>>, vector<8x128xf32>
    tpu.vector_store %arg11[%c0_92, %c0_93], %153 {strides = array<i32>} : memref<8x128xf32, #tpu.memory_space<vmem>>, vector<8x128xf32>,
    return
  }
}

</mosaic_0001>

<llo_original>
// kernel: _lambda_.1
$region0: #{_lambda_.1}
  #allocation0 [shape = 'u32[]', space=smem, size = 0x4, offset = 0x4, fixed_abs, tag = 'smem constant byte address 0x4 - core index']
  #allocation1 [shape = 'u32[144,128]{1,0:T(1,128)}', space=vmem, size = 0x12000, scoped, tag = 'internal scratch']
  #allocation2 [shape = 'f32[8,128]{1,0:T(8,128)}', space=vmem, size = 0x1000, scoped, tag = 'scratch operand']
  %s0 = inlined_call_operand.vmem [shape: s32[2,8], index: 0, kind: input, shape index: {}]
  %s1 = inlined_call_operand.vmem [shape: bf16[128,128], index: 1, kind: input, shape index: {}]
  %s2 = inlined_call_operand.vmem [shape: f32[100,1,128], index: 2, kind: input, shape index: {}]
  %s3 = inlined_call_operand.vmem [shape: bf16[128,128], index: 3, kind: input, shape index: {}]
  %s4 = inlined_call_operand.vmem [shape: f32[1,128], index: 4, kind: input, shape index: {}]
  %s5 = inlined_call_operand.vmem [shape: bf16[128,128], index: 5, kind: input, shape index: {}]
  %s6 = inlined_call_operand.vmem [shape: f32[1,128], index: 6, kind: input, shape index: {}]
  %s7 = inlined_call_operand.vmem [shape: bf16[128,128], index: 7, kind: input, shape index: {}]
  %s8 = inlined_call_operand.vmem [shape: f32[1,128], index: 8, kind: input, shape index: {}]
  %s9 = inlined_call_operand.vmem [shape: bf16[256,128], index: 9, kind: input, shape index: {}]
  %s10 = inlined_call_operand.vmem [shape: f32[1,128], index: 10, kind: input, shape index: {}]
  %s11 = inlined_call_operand.vmem [shape: f32[8,128], index: 11, kind: output, shape index: {}]
  %s12 = sld [smem:[#allocation0]]
  $region58: #{_lambda_.1} parent=0
    _
  %s14 = ssub.s32 1, %s12
  %s15 = scalar_select 0, %s14, %s12
  $region1: #{_lambda_.1} parent=0
    #allocation3 [shape = 'u8[1024]{0}', space=smem, size = 0x400, scoped, tag = 'input window, operand 0, single buffered']
    #allocation4 [shape = 's32[1]{0}', space=sflag, size = 0x4, scoped, tag = 'scoped memory for _lambda_.1']
    %16 = vsyncpa [#allocation4], 0
    // Predicated region
    $region2: #{_lambda_.1} parent=1 // pred_check
      _
    $region3: #{_lambda_.1} parent=1 // pred_check_branch
      %18 = sbr.rel (0) target = $region5
    $region4: #{_lambda_.1} parent=1 // pred_region
      %s20 = ssub.s32 32, 32
      %21 = vsyncadd [#allocation4], %s20
      %s23 = sshll.u32 %s0, 4
      %s24 = int_to_ptr.vmem [resolvable:$true] %s23
      %26 = dma.vmem_to_smem %s24, 32, [#allocation3], [#allocation4]
    $region5: #{_lambda_.1} parent=1 // pred_fallthru
      _
    // Predicated region
    $region6: #{_lambda_.1} parent=1 // pred_check
      _
    $region7: #{_lambda_.1} parent=1 // pred_check_branch
      %28 = sbr.rel (0) target = $region9
    $region8: #{_lambda_.1} parent=1 // pred_region
      _
    $region9: #{_lambda_.1} parent=1 // pred_fallthru
      _
    // Predicated region
    $region10: #{_lambda_.1} parent=1 // pred_check
      _
    $region11: #{_lambda_.1} parent=1 // pred_check_branch
      %30 = sbr.rel (0) target = $region13
    $region12: #{_lambda_.1} parent=1 // pred_region
      _
    $region13: #{_lambda_.1} parent=1 // pred_fallthru
      _
    // Predicated region
    $region14: #{_lambda_.1} parent=1 // pred_check
      _
    $region15: #{_lambda_.1} parent=1 // pred_check_branch
      %32 = sbr.rel (0) target = $region17
    $region16: #{_lambda_.1} parent=1 // pred_region
      _
    $region17: #{_lambda_.1} parent=1 // pred_fallthru
      _
    // Predicated region
    $region18: #{_lambda_.1} parent=1 // pred_check
      _
    $region19: #{_lambda_.1} parent=1 // pred_check_branch
      %34 = sbr.rel (0) target = $region21
    $region20: #{_lambda_.1} parent=1 // pred_region
      _
    $region21: #{_lambda_.1} parent=1 // pred_fallthru
      _
    // Predicated region
    $region22: #{_lambda_.1} parent=1 // pred_check
      _
    $region23: #{_lambda_.1} parent=1 // pred_check_branch
      %36 = sbr.rel (0) target = $region25
    $region24: #{_lambda_.1} parent=1 // pred_region
      _
    $region25: #{_lambda_.1} parent=1 // pred_fallthru
      _
    // Predicated region
    $region26: #{_lambda_.1} parent=1 // pred_check
      _
    $region27: #{_lambda_.1} parent=1 // pred_check_branch
      %38 = sbr.rel (0) target = $region29
    $region28: #{_lambda_.1} parent=1 // pred_region
      _
    $region29: #{_lambda_.1} parent=1 // pred_fallthru
      _
    // Predicated region
    $region30: #{_lambda_.1} parent=1 // pred_check
      _
    $region31: #{_lambda_.1} parent=1 // pred_check_branch
      %40 = sbr.rel (0) target = $region33
    $region32: #{_lambda_.1} parent=1 // pred_region
      _
    $region33: #{_lambda_.1} parent=1 // pred_fallthru
      _
    // Predicated region
    $region34: #{_lambda_.1} parent=1 // pred_check
      _
    $region35: #{_lambda_.1} parent=1 // pred_check_branch
      %42 = sbr.rel (0) target = $region37
    $region36: #{_lambda_.1} parent=1 // pred_region
      _
    $region37: #{_lambda_.1} parent=1 // pred_fallthru
      _
    // Predicated region
    $region38: #{_lambda_.1} parent=1 // pred_check
      _
    $region39: #{_lambda_.1} parent=1 // pred_check_branch
      %44 = sbr.rel (0) target = $region41
    $region40: #{_lambda_.1} parent=1 // pred_region
      _
    $region41: #{_lambda_.1} parent=1 // pred_fallthru
      _
    // Predicated region
    $region42: #{_lambda_.1} parent=1 // pred_check
      _
    $region43: #{_lambda_.1} parent=1 // pred_check_branch
      %46 = sbr.rel (0) target = $region45
    $region44: #{_lambda_.1} parent=1 // pred_region
      _
    $region45: #{_lambda_.1} parent=1 // pred_fallthru
      _
    // Predicated region
    $region46: #{_lambda_.1} parent=1 // pred_check
      _
    $region47: #{_lambda_.1} parent=1 // pred_check_branch
      %48 = sbr.rel (0) target = $region49
    $region48: #{_lambda_.1} parent=1 // pred_region
      %49 = dma.done [#allocation4], 32
    $region49: #{_lambda_.1} parent=1 // pred_fallthru
      _
    %50 = sfence
    %v52 = vld [vmem:[%s1] sm:$0xf]
    %v53 = vld [vmem:[%s1 + $0x4] sm:$0xf]
    %v54 = vld [vmem:[%s1 + $0x8] sm:$0xf]
    %v55 = vld [vmem:[%s1 + $0xc] sm:$0xf]
    %v56 = vld [vmem:[%s1 + $0x10] sm:$0xf]
    %v57 = vld [vmem:[%s1 + $0x14] sm:$0xf]
    %v58 = vld [vmem:[%s1 + $0x18] sm:$0xf]
    %v59 = vld [vmem:[%s1 + $0x1c] sm:$0xf]
    %v60 = vld [vmem:[%s1 + $0x20] sm:$0xf]
    %v61 = vld [vmem:[%s1 + $0x24] sm:$0xf]
    %v62 = vld [vmem:[%s1 + $0x28] sm:$0xf]
    %v63 = vld [vmem:[%s1 + $0x2c] sm:$0xf]
    %v64 = vld [vmem:[%s1 + $0x30] sm:$0xf]
    %v65 = vld [vmem:[%s1 + $0x34] sm:$0xf]
    %v66 = vld [vmem:[%s1 + $0x38] sm:$0xf]
    %v67 = vld [vmem:[%s1 + $0x3c] sm:$0xf]
    %v68 = vld [vmem:[%s3] sm:$0xf]
    %v69 = vld [vmem:[%s3 + $0x4] sm:$0xf]
    %v70 = vld [vmem:[%s3 + $0x8] sm:$0xf]
    %v71 = vld [vmem:[%s3 + $0xc] sm:$0xf]
    %v72 = vld [vmem:[%s3 + $0x10] sm:$0xf]
    %v73 = vld [vmem:[%s3 + $0x14] sm:$0xf]
    %v74 = vld [vmem:[%s3 + $0x18] sm:$0xf]
    %v75 = vld [vmem:[%s3 + $0x1c] sm:$0xf]
    %v76 = vld [vmem:[%s3 + $0x20] sm:$0xf]
    %v77 = vld [vmem:[%s3 + $0x24] sm:$0xf]
    %v78 = vld [vmem:[%s3 + $0x28] sm:$0xf]
    %v79 = vld [vmem:[%s3 + $0x2c] sm:$0xf]
    %v80 = vld [vmem:[%s3 + $0x30] sm:$0xf]
    %v81 = vld [vmem:[%s3 + $0x34] sm:$0xf]
    %v82 = vld [vmem:[%s3 + $0x38] sm:$0xf]
    %v83 = vld [vmem:[%s3 + $0x3c] sm:$0xf]
    %v84 = vld [vmem:[%s4] sm:$0x1]
    %v86 = vlaneseq
    %v87 = vshrl.u32 %v86, 7
    %v88 = vsub.s32 0, %v87
    %v89 = vrot.slane %v84, %v88
    %v107 = vunpack.c.l.b16 %v52
    %v108 = vunpack.c.l.b16 %v53
    %v109 = vunpack.c.l.b16 %v54
    %v110 = vunpack.c.l.b16 %v55
    %v111 = vunpack.c.l.b16 %v56
    %v112 = vunpack.c.l.b16 %v57
    %v113 = vunpack.c.l.b16 %v58
    %v114 = vunpack.c.l.b16 %v59
    %v115 = vunpack.c.l.b16 %v60
    %v116 = vunpack.c.l.b16 %v61
    %v117 = vunpack.c.l.b16 %v62
    %v118 = vunpack.c.l.b16 %v63
    %v119 = vunpack.c.l.b16 %v64
    %v120 = vunpack.c.l.b16 %v65
    %v121 = vunpack.c.l.b16 %v66
    %v122 = vunpack.c.l.b16 %v67
    %v123 = vpack.c.b16 %v108, %v107
    %v124 = vpack.c.b16 %v110, %v109
    %v125 = vpack.c.b16 %v112, %v111
    %v126 = vpack.c.b16 %v114, %v113
    %v127 = vpack.c.b16 %v116, %v115
    %v128 = vpack.c.b16 %v118, %v117
    %v129 = vpack.c.b16 %v120, %v119
    %v130 = vpack.c.b16 %v122, %v121
    %v155 = vunpack.c.l.b16 %v68
    %v156 = vunpack.c.l.b16 %v69
    %v157 = vunpack.c.l.b16 %v70
    %v158 = vunpack.c.l.b16 %v71
    %v159 = vunpack.c.l.b16 %v72
    %v160 = vunpack.c.l.b16 %v73
    %v161 = vunpack.c.l.b16 %v74
    %v162 = vunpack.c.l.b16 %v75
    %v163 = vunpack.c.l.b16 %v76
    %v164 = vunpack.c.l.b16 %v77
    %v165 = vunpack.c.l.b16 %v78
    %v166 = vunpack.c.l.b16 %v79
    %v167 = vunpack.c.l.b16 %v80
    %v168 = vunpack.c.l.b16 %v81
    %v169 = vunpack.c.l.b16 %v82
    %v170 = vunpack.c.l.b16 %v83
    %v171 = vpack.c.b16 %v156, %v155
    %v172 = vpack.c.b16 %v158, %v157
    %v173 = vpack.c.b16 %v160, %v159
    %v174 = vpack.c.b16 %v162, %v161
    %v175 = vpack.c.b16 %v164, %v163
    %v176 = vpack.c.b16 %v166, %v165
    %v177 = vpack.c.b16 %v168, %v167
    %v178 = vpack.c.b16 %v170, %v169
    %187 = vmatprep.subr.bf16.mxu0 0
    %188 = vmatpush1.bf16.msra.mxu0 %v171
    %189 = vmatprep.subr.bf16.mxu0 0
    %190 = vmatpush1.bf16.msra.mxu0 %v172
    %191 = vmatprep.subr.bf16.mxu0 0
    %192 = vmatpush1.bf16.msra.mxu0 %v173
    %193 = vmatprep.subr.bf16.mxu0 0
    %194 = vmatpush1.bf16.msra.mxu0 %v174
    %195 = vmatprep.subr.bf16.mxu0 0
    %196 = vmatpush1.bf16.msra.mxu0 %v175
    %197 = vmatprep.subr.bf16.mxu0 0
    %198 = vmatpush1.bf16.msra.mxu0 %v176
    %199 = vmatprep.subr.bf16.mxu0 0
    %200 = vmatpush1.bf16.msra.mxu0 %v177
    %201 = vmatprep.subr.bf16.mxu0 0
    %202 = vmatpush1.bf16.msra.mxu0 %v178
    %203 = vmatprep.subr.bf16.mxu0 0
    %204 = vmatpush1.bf16.msra.mxu0 0
    %205 = vmatprep.subr.bf16.mxu0 0
    %206 = vmatpush1.bf16.msra.mxu0 0
    %207 = vmatprep.subr.bf16.mxu0 0
    %208 = vmatpush1.bf16.msra.mxu0 0
    %209 = vmatprep.subr.bf16.mxu0 0
    %210 = vmatpush1.bf16.msra.mxu0 0
    %211 = vmatprep.subr.bf16.mxu0 0
    %212 = vmatpush1.bf16.msra.mxu0 0
    %213 = vmatprep.subr.bf16.mxu0 0
    %214 = vmatpush1.bf16.msra.mxu0 0
    %215 = vmatprep.subr.bf16.mxu0 0
    %216 = vmatpush1.bf16.msra.mxu0 0
    %217 = vmatprep.subr.bf16.mxu0 0
    %218 = vmatpush1.bf16.msra.mxu0 0
    %219 = vmatprep.mubr.bf16.mxu0 0
    %220 = vmatmul.mubr.bf16.gmra.mrb[0].mxu0 %v123
    %v221 = vpop.f32.mrb[0].mxu0
    %v222 = vadd.f32 %v89, %v221
    %v223 = vpop.f32.mrb[0].mxu0
    %v224 = vpop.f32.mrb[0].mxu0
    %v225 = vadd.f32 %v89, %v224
    %v226 = vpop.f32.mrb[0].mxu0
    %227 = vmatprep.mubr.bf16.mxu0 0
    %228 = vmatmul.mubr.bf16.gmra.mrb[0].mxu0 %v124
    %v229 = vpop.f32.mrb[0].mxu0
    %v230 = vadd.f32 %v89, %v229
    %v231 = vpop.f32.mrb[0].mxu0
    %v232 = vpop.f32.mrb[0].mxu0
    %v233 = vadd.f32 %v89, %v232
    %v234 = vpop.f32.mrb[0].mxu0
    %235 = vmatprep.mubr.bf16.mxu0 0
    %236 = vmatmul.mubr.bf16.gmra.mrb[0].mxu0 %v125
    %v237 = vpop.f32.mrb[0].mxu0
    %v238 = vadd.f32 %v89, %v237
    %v239 = vpop.f32.mrb[0].mxu0
    %v240 = vpop.f32.mrb[0].mxu0
    %v241 = vadd.f32 %v89, %v240
    %v242 = vpop.f32.mrb[0].mxu0
    %243 = vmatprep.mubr.bf16.mxu0 0
    %244 = vmatmul.mubr.bf16.gmra.mrb[0].mxu0 %v126
    %v245 = vpop.f32.mrb[0].mxu0
    %v246 = vadd.f32 %v89, %v245
    %v247 = vpop.f32.mrb[0].mxu0
    %v248 = vpop.f32.mrb[0].mxu0
    %v249 = vadd.f32 %v89, %v248
    %v250 = vpop.f32.mrb[0].mxu0
    %251 = vmatprep.mubr.bf16.mxu0 0
    %252 = vmatmul.mubr.bf16.gmra.mrb[0].mxu0 %v127
    %v253 = vpop.f32.mrb[0].mxu0
    %v254 = vadd.f32 %v89, %v253
    %v255 = vpop.f32.mrb[0].mxu0
    %v256 = vpop.f32.mrb[0].mxu0
    %v257 = vadd.f32 %v89, %v256
    %v258 = vpop.f32.mrb[0].mxu0
    %259 = vmatprep.mubr.bf16.mxu0 0
    %260 = vmatmul.mubr.bf16.gmra.mrb[0].mxu0 %v128
    %v261 = vpop.f32.mrb[0].mxu0
    %v262 = vadd.f32 %v89, %v261
    %v263 = vpop.f32.mrb[0].mxu0
    %v264 = vpop.f32.mrb[0].mxu0
    %v265 = vadd.f32 %v89, %v264
    %v266 = vpop.f32.mrb[0].mxu0
    %267 = vmatprep.mubr.bf16.mxu0 0
    %268 = vmatmul.mubr.bf16.gmra.mrb[0].mxu0 %v129
    %v269 = vpop.f32.mrb[0].mxu0
    %v270 = vadd.f32 %v89, %v269
    %v271 = vpop.f32.mrb[0].mxu0
    %v272 = vpop.f32.mrb[0].mxu0
    %v273 = vadd.f32 %v89, %v272
    %v274 = vpop.f32.mrb[0].mxu0
    %275 = vmatprep.mubr.bf16.mxu0 0
    %276 = vmatmul.mubr.bf16.gmra.mrb[0].mxu0 %v130
    %v277 = vpop.f32.mrb[0].mxu0
    %v278 = vadd.f32 %v89, %v277
    %v279 = vpop.f32.mrb[0].mxu0
    %v280 = vpop.f32.mrb[0].mxu0
    %v281 = vadd.f32 %v89, %v280
    %v282 = vpop.f32.mrb[0].mxu0
    %283 = vdwg.mxu0
    %v284 = vtanh.pop %v222
    %v285 = vtanh.pop %v225
    %v286 = vtanh.pop %v230
    %v287 = vtanh.pop %v233
    %v288 = vtanh.pop %v238
    %v289 = vtanh.pop %v241
    %v290 = vtanh.pop %v246
    %v291 = vtanh.pop %v249
    %v292 = vtanh.pop %v254
    %v293 = vtanh.pop %v257
    %v294 = vtanh.pop %v262
    %v295 = vtanh.pop %v265
    %v296 = vtanh.pop %v270
    %v297 = vtanh.pop %v273
    %v298 = vtanh.pop %v278
    %v299 = vtanh.pop %v281
    %v300 = vadd.f32 %v284, 0.0
    %v301 = vadd.f32 %v300, %v285
    %v302 = vadd.f32 %v301, %v286
    %v303 = vadd.f32 %v302, %v287
    %v304 = vadd.f32 %v303, %v288
    %v305 = vadd.f32 %v304, %v289
    %v306 = vadd.f32 %v305, %v290
    %v307 = vadd.f32 %v306, %v291
    %v308 = vadd.f32 %v307, %v292
    %v309 = vadd.f32 %v308, %v293
    %v310 = vadd.f32 %v309, %v294
    %v311 = vadd.f32 %v310, %v295
    %v312 = vadd.f32 %v311, %v296
    %v313 = vadd.f32 %v312, %v297
    %v314 = vadd.f32 %v313, %v298
    %v315 = vadd.f32 %v314, %v299
    %v316 = vmul.f32 %v315, 0.0625
    %v317 = vpack.c.bf16 %v316, %v316
    %v318 = vld [vmem:[%s5] sm:$0xf]
    %v319 = vld [vmem:[%s5 + $0x4] sm:$0xf]
    %v320 = vld [vmem:[%s5 + $0x8] sm:$0xf]
    %v321 = vld [vmem:[%s5 + $0xc] sm:$0xf]
    %v322 = vld [vmem:[%s5 + $0x10] sm:$0xf]
    %v323 = vld [vmem:[%s5 + $0x14] sm:$0xf]
    %v324 = vld [vmem:[%s5 + $0x18] sm:$0xf]
    %v325 = vld [vmem:[%s5 + $0x1c] sm:$0xf]
    %v326 = vld [vmem:[%s5 + $0x20] sm:$0xf]
    %v327 = vld [vmem:[%s5 + $0x24] sm:$0xf]
    %v328 = vld [vmem:[%s5 + $0x28] sm:$0xf]
    %v329 = vld [vmem:[%s5 + $0x2c] sm:$0xf]
    %v330 = vld [vmem:[%s5 + $0x30] sm:$0xf]
    %v331 = vld [vmem:[%s5 + $0x34] sm:$0xf]
    %v332 = vld [vmem:[%s5 + $0x38] sm:$0xf]
    %v333 = vld [vmem:[%s5 + $0x3c] sm:$0xf]
    %v334 = vld [vmem:[%s6] sm:$0x1]
    %v336 = vlaneseq
    %v337 = vshrl.u32 %v336, 7
    %v338 = vsub.s32 0, %v337
    %v339 = vrot.slane %v334, %v338
    %v357 = vunpack.c.l.b16 %v318
    %v358 = vunpack.c.l.b16 %v319
    %v359 = vunpack.c.l.b16 %v320
    %v360 = vunpack.c.l.b16 %v321
    %v361 = vunpack.c.l.b16 %v322
    %v362 = vunpack.c.l.b16 %v323
    %v363 = vunpack.c.l.b16 %v324
    %v364 = vunpack.c.l.b16 %v325
    %v365 = vunpack.c.l.b16 %v326
    %v366 = vunpack.c.l.b16 %v327
    %v367 = vunpack.c.l.b16 %v328
    %v368 = vunpack.c.l.b16 %v329
    %v369 = vunpack.c.l.b16 %v330
    %v370 = vunpack.c.l.b16 %v331
    %v371 = vunpack.c.l.b16 %v332
    %v372 = vunpack.c.l.b16 %v333
    %v373 = vpack.c.b16 %v358, %v357
    %v374 = vpack.c.b16 %v360, %v359
    %v375 = vpack.c.b16 %v362, %v361
    %v376 = vpack.c.b16 %v364, %v363
    %v377 = vpack.c.b16 %v366, %v365
    %v378 = vpack.c.b16 %v368, %v367
    %v379 = vpack.c.b16 %v370, %v369
    %v380 = vpack.c.b16 %v372, %v371
    %389 = vmatprep.subr.bf16.mxu0 0
    %390 = vmatpush1.bf16.msra.mxu0 %v373
    %391 = vmatprep.subr.bf16.mxu0 0
    %392 = vmatpush1.bf16.msra.mxu0 %v374
    %393 = vmatprep.subr.bf16.mxu0 0
    %394 = vmatpush1.bf16.msra.mxu0 %v375
    %395 = vmatprep.subr.bf16.mxu0 0
    %396 = vmatpush1.bf16.msra.mxu0 %v376
    %397 = vmatprep.subr.bf16.mxu0 0
    %398 = vmatpush1.bf16.msra.mxu0 %v377
    %399 = vmatprep.subr.bf16.mxu0 0
    %400 = vmatpush1.bf16.msra.mxu0 %v378
    %401 = vmatprep.subr.bf16.mxu0 0
    %402 = vmatpush1.bf16.msra.mxu0 %v379
    %403 = vmatprep.subr.bf16.mxu0 0
    %404 = vmatpush1.bf16.msra.mxu0 %v380
    %405 = vmatprep.subr.bf16.mxu0 0
    %406 = vmatpush1.bf16.msra.mxu0 0
    %407 = vmatprep.subr.bf16.mxu0 0
    %408 = vmatpush1.bf16.msra.mxu0 0
    %409 = vmatprep.subr.bf16.mxu0 0
    %410 = vmatpush1.bf16.msra.mxu0 0
    %411 = vmatprep.subr.bf16.mxu0 0
    %412 = vmatpush1.bf16.msra.mxu0 0
    %413 = vmatprep.subr.bf16.mxu0 0
    %414 = vmatpush1.bf16.msra.mxu0 0
    %415 = vmatprep.subr.bf16.mxu0 0
    %416 = vmatpush1.bf16.msra.mxu0 0
    %417 = vmatprep.subr.bf16.mxu0 0
    %418 = vmatpush1.bf16.msra.mxu0 0
    %419 = vmatprep.subr.bf16.mxu0 0
    %420 = vmatpush1.bf16.msra.mxu0 0
    %421 = vmatprep.mubr.bf16.mxu0 0
    %422 = vmatmul.mubr.bf16.gmra.mrb[0].mxu0 %v317
    %v423 = vpop.f32.mrb[0].mxu0
    %v424 = vadd.f32 %v339, %v423
    %v425 = vpop.f32.mrb[0].mxu0
    %v426 = vpop.f32.mrb[0].mxu0
    %v427 = vpop.f32.mrb[0].mxu0
    %428 = vdwg.mxu0
    %v429 = vtanh.pop %v424
    %430 = vst [vmem:[#allocation2] sm:$0xff] 0.0
    %s431 = sld [smem:[#allocation3]]
    %s432 = scalar_lea.vmem %s2, %s431
    %v433 = vld [vmem:[%s432] sm:$0x1]
    %v434 = vadd.f32 %v433, 0.0
    %s435 = sld [smem:[#allocation3 + $0x1]]
    %s436 = scalar_lea.vmem %s2, %s435
    %v437 = vld [vmem:[%s436] sm:$0x1]
    %v438 = vadd.f32 %v434, %v437
    %s439 = sld [smem:[#allocation3 + $0x2]]
    %s440 = scalar_lea.vmem %s2, %s439
    %v441 = vld [vmem:[%s440] sm:$0x1]
    %v442 = vadd.f32 %v438, %v441
    %s443 = sld [smem:[#allocation3 + $0x3]]
    %s444 = scalar_lea.vmem %s2, %s443
    %v445 = vld [vmem:[%s444] sm:$0x1]
    %v446 = vadd.f32 %v442, %v445
    %s447 = sld [smem:[#allocation3 + $0x4]]
    %s448 = scalar_lea.vmem %s2, %s447
    %v449 = vld [vmem:[%s448] sm:$0x1]
    %v450 = vadd.f32 %v446, %v449
    %s451 = sld [smem:[#allocation3 + $0x5]]
    %s452 = scalar_lea.vmem %s2, %s451
    %v453 = vld [vmem:[%s452] sm:$0x1]
    %v454 = vadd.f32 %v450, %v453
    %s455 = sld [smem:[#allocation3 + $0x6]]
    %s456 = scalar_lea.vmem %s2, %s455
    %v457 = vld [vmem:[%s456] sm:$0x1]
    %v458 = vadd.f32 %v454, %v457
    %s459 = sld [smem:[#allocation3 + $0x7]]
    %s460 = scalar_lea.vmem %s2, %s459
    %v461 = vld [vmem:[%s460] sm:$0x1]
    %v462 = vadd.f32 %v458, %v461
    %v463 = vmul.f32 %v462, 0.125
    %464 = vst [vmem:[#allocation2] sm:$0x1] %v463
    %s465 = sld [smem:[#allocation3 + $0x80]]
    %s466 = scalar_lea.vmem %s2, %s465
    %v467 = vld [vmem:[%s466] sm:$0x1]
    %v468 = vadd.f32 %v467, 0.0
    %s469 = sld [smem:[#allocation3 + $0x81]]
    %s470 = scalar_lea.vmem %s2, %s469
    %v471 = vld [vmem:[%s470] sm:$0x1]
    %v472 = vadd.f32 %v468, %v471
    %s473 = sld [smem:[#allocation3 + $0x82]]
    %s474 = scalar_lea.vmem %s2, %s473
    %v475 = vld [vmem:[%s474] sm:$0x1]
    %v476 = vadd.f32 %v472, %v475
    %s477 = sld [smem:[#allocation3 + $0x83]]
    %s478 = scalar_lea.vmem %s2, %s477
    %v479 = vld [vmem:[%s478] sm:$0x1]
    %v480 = vadd.f32 %v476, %v479
    %s481 = sld [smem:[#allocation3 + $0x84]]
    %s482 = scalar_lea.vmem %s2, %s481
    %v483 = vld [vmem:[%s482] sm:$0x1]
    %v484 = vadd.f32 %v480, %v483
    %s485 = sld [smem:[#allocation3 + $0x85]]
    %s486 = scalar_lea.vmem %s2, %s485
    %v487 = vld [vmem:[%s486] sm:$0x1]
    %v488 = vadd.f32 %v484, %v487
    %s489 = sld [smem:[#allocation3 + $0x86]]
    %s490 = scalar_lea.vmem %s2, %s489
    %v491 = vld [vmem:[%s490] sm:$0x1]
    %v492 = vadd.f32 %v488, %v491
    %s493 = sld [smem:[#allocation3 + $0x87]]
    %s494 = scalar_lea.vmem %s2, %s493
    %v495 = vld [vmem:[%s494] sm:$0x1]
    %v496 = vadd.f32 %v492, %v495
    %v497 = vmul.f32 %v496, 0.125
    %498 = vst [vmem:[#allocation2 + $0x1] sm:$0x1] %v497
    %v499 = vld [vmem:[#allocation2] sm:$0xff]
    %v500 = vpack.c.bf16 %v499, %v499
    %v501 = vld [vmem:[%s7] sm:$0xf]
    %v502 = vld [vmem:[%s7 + $0x4] sm:$0xf]
    %v503 = vld [vmem:[%s7 + $0x8] sm:$0xf]
    %v504 = vld [vmem:[%s7 + $0xc] sm:$0xf]
    %v505 = vld [vmem:[%s7 + $0x10] sm:$0xf]
    %v506 = vld [vmem:[%s7 + $0x14] sm:$0xf]
    %v507 = vld [vmem:[%s7 + $0x18] sm:$0xf]
    %v508 = vld [vmem:[%s7 + $0x1c] sm:$0xf]
    %v509 = vld [vmem:[%s7 + $0x20] sm:$0xf]
    %v510 = vld [vmem:[%s7 + $0x24] sm:$0xf]
    %v511 = vld [vmem:[%s7 + $0x28] sm:$0xf]
    %v512 = vld [vmem:[%s7 + $0x2c] sm:$0xf]
    %v513 = vld [vmem:[%s7 + $0x30] sm:$0xf]
    %v514 = vld [vmem:[%s7 + $0x34] sm:$0xf]
    %v515 = vld [vmem:[%s7 + $0x38] sm:$0xf]
    %v516 = vld [vmem:[%s7 + $0x3c] sm:$0xf]
    %v517 = vld [vmem:[%s8] sm:$0x1]
    %v519 = vlaneseq
    %v520 = vshrl.u32 %v519, 7
    %v521 = vsub.s32 0, %v520
    %v522 = vrot.slane %v517, %v521
    %v540 = vunpack.c.l.b16 %v501
    %v541 = vunpack.c.l.b16 %v502
    %v542 = vunpack.c.l.b16 %v503
    %v543 = vunpack.c.l.b16 %v504
    %v544 = vunpack.c.l.b16 %v505
    %v545 = vunpack.c.l.b16 %v506
    %v546 = vunpack.c.l.b16 %v507
    %v547 = vunpack.c.l.b16 %v508
    %v548 = vunpack.c.l.b16 %v509
    %v549 = vunpack.c.l.b16 %v510
    %v550 = vunpack.c.l.b16 %v511
    %v551 = vunpack.c.l.b16 %v512
    %v552 = vunpack.c.l.b16 %v513
    %v553 = vunpack.c.l.b16 %v514
    %v554 = vunpack.c.l.b16 %v515
    %v555 = vunpack.c.l.b16 %v516
    %v556 = vpack.c.b16 %v541, %v540
    %v557 = vpack.c.b16 %v543, %v542
    %v558 = vpack.c.b16 %v545, %v544
    %v559 = vpack.c.b16 %v547, %v546
    %v560 = vpack.c.b16 %v549, %v548
    %v561 = vpack.c.b16 %v551, %v550
    %v562 = vpack.c.b16 %v553, %v552
    %v563 = vpack.c.b16 %v555, %v554
    %572 = vmatprep.subr.bf16.mxu0 0
    %573 = vmatpush1.bf16.msra.mxu0 %v556
    %574 = vmatprep.subr.bf16.mxu0 0
    %575 = vmatpush1.bf16.msra.mxu0 %v557
    %576 = vmatprep.subr.bf16.mxu0 0
    %577 = vmatpush1.bf16.msra.mxu0 %v558
    %578 = vmatprep.subr.bf16.mxu0 0
    %579 = vmatpush1.bf16.msra.mxu0 %v559
    %580 = vmatprep.subr.bf16.mxu0 0
    %581 = vmatpush1.bf16.msra.mxu0 %v560
    %582 = vmatprep.subr.bf16.mxu0 0
    %583 = vmatpush1.bf16.msra.mxu0 %v561
    %584 = vmatprep.subr.bf16.mxu0 0
    %585 = vmatpush1.bf16.msra.mxu0 %v562
    %586 = vmatprep.subr.bf16.mxu0 0
    %587 = vmatpush1.bf16.msra.mxu0 %v563
    %588 = vmatprep.subr.bf16.mxu0 0
    %589 = vmatpush1.bf16.msra.mxu0 0
    %590 = vmatprep.subr.bf16.mxu0 0
    %591 = vmatpush1.bf16.msra.mxu0 0
    %592 = vmatprep.subr.bf16.mxu0 0
    %593 = vmatpush1.bf16.msra.mxu0 0
    %594 = vmatprep.subr.bf16.mxu0 0
    %595 = vmatpush1.bf16.msra.mxu0 0
    %596 = vmatprep.subr.bf16.mxu0 0
    %597 = vmatpush1.bf16.msra.mxu0 0
    %598 = vmatprep.subr.bf16.mxu0 0
    %599 = vmatpush1.bf16.msra.mxu0 0
    %600 = vmatprep.subr.bf16.mxu0 0
    %601 = vmatpush1.bf16.msra.mxu0 0
    %602 = vmatprep.subr.bf16.mxu0 0
    %603 = vmatpush1.bf16.msra.mxu0 0
    %604 = vmatprep.mubr.bf16.mxu0 0
    %605 = vmatmul.mubr.bf16.gmra.mrb[0].mxu0 %v500
    %v606 = vpop.f32.mrb[0].mxu0
    %v607 = vadd.f32 %v522, %v606
    %v608 = vpop.f32.mrb[0].mxu0
    %v609 = vpop.f32.mrb[0].mxu0
    %v610 = vpop.f32.mrb[0].mxu0
    %611 = vdwg.mxu0
    %v612 = vtanh.pop %v607
    %v613 = vpack.c.bf16 %v612, %v612
    %v614 = vpack.c.bf16 %v429, %v429
    %v615 = vld [vmem:[%s9] sm:$0xf]
    %v616 = vld [vmem:[%s9 + $0x4] sm:$0xf]
    %v617 = vld [vmem:[%s9 + $0x8] sm:$0xf]
    %v618 = vld [vmem:[%s9 + $0xc] sm:$0xf]
    %v619 = vld [vmem:[%s9 + $0x10] sm:$0xf]
    %v620 = vld [vmem:[%s9 + $0x14] sm:$0xf]
    %v621 = vld [vmem:[%s9 + $0x18] sm:$0xf]
    %v622 = vld [vmem:[%s9 + $0x1c] sm:$0xf]
    %v623 = vld [vmem:[%s9 + $0x20] sm:$0xf]
    %v624 = vld [vmem:[%s9 + $0x24] sm:$0xf]
    %v625 = vld [vmem:[%s9 + $0x28] sm:$0xf]
    %v626 = vld [vmem:[%s9 + $0x2c] sm:$0xf]
    %v627 = vld [vmem:[%s9 + $0x30] sm:$0xf]
    %v628 = vld [vmem:[%s9 + $0x34] sm:$0xf]
    %v629 = vld [vmem:[%s9 + $0x38] sm:$0xf]
    %v630 = vld [vmem:[%s9 + $0x3c] sm:$0xf]
    %v631 = vld [vmem:[%s9 + $0x40] sm:$0xf]
    %v632 = vld [vmem:[%s9 + $0x44] sm:$0xf]
    %v633 = vld [vmem:[%s9 + $0x48] sm:$0xf]
    %v634 = vld [vmem:[%s9 + $0x4c] sm:$0xf]
    %v635 = vld [vmem:[%s9 + $0x50] sm:$0xf]
    %v636 = vld [vmem:[%s9 + $0x54] sm:$0xf]
    %v637 = vld [vmem:[%s9 + $0x58] sm:$0xf]
    %v638 = vld [vmem:[%s9 + $0x5c] sm:$0xf]
    %v639 = vld [vmem:[%s9 + $0x60] sm:$0xf]
    %v640 = vld [vmem:[%s9 + $0x64] sm:$0xf]
    %v641 = vld [vmem:[%s9 + $0x68] sm:$0xf]
    %v642 = vld [vmem:[%s9 + $0x6c] sm:$0xf]
    %v643 = vld [vmem:[%s9 + $0x70] sm:$0xf]
    %v644 = vld [vmem:[%s9 + $0x74] sm:$0xf]
    %v645 = vld [vmem:[%s9 + $0x78] sm:$0xf]
    %v646 = vld [vmem:[%s9 + $0x7c] sm:$0xf]
    %v647 = vld [vmem:[%s10] sm:$0x1]
    %v649 = vlaneseq
    %v650 = vshrl.u32 %v649, 7
    %v651 = vsub.s32 0, %v650
    %v652 = vrot.slane %v647, %v651
    %v686 = vunpack.c.l.b16 %v615
    %v687 = vunpack.c.l.b16 %v616
    %v688 = vunpack.c.l.b16 %v617
    %v689 = vunpack.c.l.b16 %v618
    %v690 = vunpack.c.l.b16 %v619
    %v691 = vunpack.c.l.b16 %v620
    %v692 = vunpack.c.l.b16 %v621
    %v693 = vunpack.c.l.b16 %v622
    %v694 = vunpack.c.l.b16 %v623
    %v695 = vunpack.c.l.b16 %v624
    %v696 = vunpack.c.l.b16 %v625
    %v697 = vunpack.c.l.b16 %v626
    %v698 = vunpack.c.l.b16 %v627
    %v699 = vunpack.c.l.b16 %v628
    %v700 = vunpack.c.l.b16 %v629
    %v701 = vunpack.c.l.b16 %v630
    %v702 = vunpack.c.l.b16 %v631
    %v703 = vunpack.c.l.b16 %v632
    %v704 = vunpack.c.l.b16 %v633
    %v705 = vunpack.c.l.b16 %v634
    %v706 = vunpack.c.l.b16 %v635
    %v707 = vunpack.c.l.b16 %v636
    %v708 = vunpack.c.l.b16 %v637
    %v709 = vunpack.c.l.b16 %v638
    %v710 = vunpack.c.l.b16 %v639
    %v711 = vunpack.c.l.b16 %v640
    %v712 = vunpack.c.l.b16 %v641
    %v713 = vunpack.c.l.b16 %v642
    %v714 = vunpack.c.l.b16 %v643
    %v715 = vunpack.c.l.b16 %v644
    %v716 = vunpack.c.l.b16 %v645
    %v717 = vunpack.c.l.b16 %v646
    %v718 = vpack.c.b16 %v687, %v686
    %v719 = vpack.c.b16 %v689, %v688
    %v720 = vpack.c.b16 %v691, %v690
    %v721 = vpack.c.b16 %v693, %v692
    %v722 = vpack.c.b16 %v695, %v694
    %v723 = vpack.c.b16 %v697, %v696
    %v724 = vpack.c.b16 %v699, %v698
    %v725 = vpack.c.b16 %v701, %v700
    %v726 = vpack.c.b16 %v703, %v702
    %v727 = vpack.c.b16 %v705, %v704
    %v728 = vpack.c.b16 %v707, %v706
    %v729 = vpack.c.b16 %v709, %v708
    %v730 = vpack.c.b16 %v711, %v710
    %v731 = vpack.c.b16 %v713, %v712
    %v732 = vpack.c.b16 %v715, %v714
    %v733 = vpack.c.b16 %v717, %v716
    %750 = vmatprep.subr.bf16.mxu0 0
    %751 = vmatpush1.bf16.msra.mxu0 %v718
    %752 = vmatprep.subr.bf16.mxu0 0
    %753 = vmatpush1.bf16.msra.mxu0 %v719
    %754 = vmatprep.subr.bf16.mxu0 0
    %755 = vmatpush1.bf16.msra.mxu0 %v720
    %756 = vmatprep.subr.bf16.mxu0 0
    %757 = vmatpush1.bf16.msra.mxu0 %v721
    %758 = vmatprep.subr.bf16.mxu0 0
    %759 = vmatpush1.bf16.msra.mxu0 %v722
    %760 = vmatprep.subr.bf16.mxu0 0
    %761 = vmatpush1.bf16.msra.mxu0 %v723
    %762 = vmatprep.subr.bf16.mxu0 0
    %763 = vmatpush1.bf16.msra.mxu0 %v724
    %764 = vmatprep.subr.bf16.mxu0 0
    %765 = vmatpush1.bf16.msra.mxu0 %v725
    %766 = vmatprep.subr.bf16.mxu0 0
    %767 = vmatpush1.bf16.msra.mxu0 %v726
    %768 = vmatprep.subr.bf16.mxu0 0
    %769 = vmatpush1.bf16.msra.mxu0 %v727
    %770 = vmatprep.subr.bf16.mxu0 0
    %771 = vmatpush1.bf16.msra.mxu0 %v728
    %772 = vmatprep.subr.bf16.mxu0 0
    %773 = vmatpush1.bf16.msra.mxu0 %v729
    %774 = vmatprep.subr.bf16.mxu0 0
    %775 = vmatpush1.bf16.msra.mxu0 %v730
    %776 = vmatprep.subr.bf16.mxu0 0
    %777 = vmatpush1.bf16.msra.mxu0 %v731
    %778 = vmatprep.subr.bf16.mxu0 0
    %779 = vmatpush1.bf16.msra.mxu0 %v732
    %780 = vmatprep.subr.bf16.mxu0 0
    %781 = vmatpush1.bf16.msra.mxu0 %v733
    %782 = vmatprep.mubr.bf16.mxu0 %v614
    %783 = vmatmul.mubr.bf16.gmra.mrb[0].mxu0 %v613
    %v784 = vpop.f32.mrb[0].mxu0
    %v785 = vadd.f32 %v652, %v784
    %v786 = vpop.f32.mrb[0].mxu0
    %v787 = vpop.f32.mrb[0].mxu0
    %v788 = vpop.f32.mrb[0].mxu0
    %789 = vdwg.mxu0
    %790 = vst [vmem:[%s11] sm:$0xff] %v785
    // Predicated region
    $region50: #{_lambda_.1} parent=1 // pred_check
      _
    $region51: #{_lambda_.1} parent=1 // pred_check_branch
      %792 = sbr.rel (0) target = $region53
    $region52: #{_lambda_.1} parent=1 // pred_region
      _
    $region53: #{_lambda_.1} parent=1 // pred_fallthru
      _
    // Predicated region
    $region54: #{_lambda_.1} parent=1 // pred_check
      _
    $region55: #{_lambda_.1} parent=1 // pred_check_branch
      %794 = sbr.rel (0) target = $region57
    $region56: #{_lambda_.1} parent=1 // pred_region
      _
    $region57: #{_lambda_.1} parent=1 // pred_fallthru
      _
    %795 = vsyncpa [#allocation4], 1

</llo_original>
